<compile_context>
chip_gen: v7x
topology: tpu7x:2x2x1
jax: 0.10.0
libtpu: 0.0.40
codegen_flags: <defaults>
</compile_context>

<pallas_src>
import functools

import jax
import jax.numpy as jnp
from jax.experimental import pallas as pl
from jax.experimental.pallas import tpu as pltpu

ALPHA = 0.25
GAMMA = 2.0  # gamma == 2 -> explicit square below (no pow / extra EUP work)

_LANES = 128
_SUBLANES = 8

_VMEM_LIMIT_BYTES = 32 * 1024 * 1024   # scoped-VMEM request; <= v7x's 32 MiB default
_VMEM_PLAN_BUDGET = 24 * 1024 * 1024   # target for tiles + live intermediates (v7x-safe)
_COL_BYTES = 512                        # one (TM, 1) f32 column lane-pads to 512 B / row


def _round_up(x, m):
    return ((x + m - 1) // m) * m


def _row_alignment(itemsize):
    # Packed-sublane tile constraint: f32 -> 8 rows, bf16/f16 -> 16, int8/fp8 -> 32.
    return _SUBLANES * max(1, 4 // int(itemsize))


def focal_loss_kernel(logits_ref, targets_ref, out_ref, *, n_total):
    """One batch tile: (TM, C) logits + (TM, 1) targets -> (1, 8, 128) partial sum."""
    i = pl.program_id(0)
    tm = logits_ref.shape[0]

    # Cast in VMEM; the HBM stream stays in the input's native dtype (bf16/f32).
    x = logits_ref[...].astype(jnp.float32)            # (TM, C)
    t = targets_ref[...]                                # (TM, 1) int32

    # Ragged-tail mask; clamp padded rows BEFORE exp/log so garbage never
    # produces Inf/NaN intermediates (they are zeroed here, masked out below).
    row = jax.lax.broadcasted_iota(jnp.int32, (tm, 1), 0)
    valid = (i * tm + row) < n_total                    # (TM, 1) bool
    x = jnp.where(valid, x, 0.0)
    t = jnp.where(valid, t, 0)

    # Numerically-stable log-sum-exp over the class (lane) axis.
    m = jnp.max(x, axis=-1, keepdims=True)              # (TM, 1)
    e = jnp.exp(x - m)                                   # (TM, C), reused below
    sumexp = jnp.sum(e, axis=-1, keepdims=True)          # (TM, 1)
    lse = m + jnp.log(sumexp)

    # One-hot gather of the target logit, and of exp(x_t - m) by reusing `e`
    # (drops the second EUP exp(-ce) pass of the previous version).
    cls = jax.lax.broadcasted_iota(jnp.int32, x.shape, 1)
    onehot = cls == t
    tgt_logit = jnp.sum(jnp.where(onehot, x, 0.0), axis=-1, keepdims=True)
    e_tgt = jnp.sum(jnp.where(onehot, e, 0.0), axis=-1, keepdims=True)

    # Per-sample cross-entropy (== nn.CrossEntropyLoss(reduction='none')) and
    # p = softmax(x)[t] = exp(x_t - m) / sumexp.  Exact reciprocal keeps full
    # f32 accuracy (approx=True is a free EUP win if ~1e-4 rel error is OK).
    ce = lse - tgt_logit                                 # (TM, 1)
    p = e_tgt * pl.reciprocal(sumexp, approx=False)      # (TM, 1)

    # Focal weighting; gamma == 2 -> explicit square (VPU only).
    w = 1.0 - p
    focal = ALPHA * w * w * ce
    focal = jnp.where(valid, focal, 0.0)

    # Lane-dense (1, 8, 128) partial-sum block via a direct scalar broadcast:
    # single unmasked full-vreg store; the wrapper reads element [0, 0].
    out_ref[...] = jnp.broadcast_to(jnp.sum(focal), out_ref.shape)


def _choose_tm(n, c, itemsize):
    """Largest row tile whose full in-flight VMEM plan stays under budget."""
    align = _row_alignment(itemsize)
    if n <= align:
        return n  # single block equal to the full (tiny) batch dim is legal

    # Per-row VMEM while one tile is in flight:
    #   2 x native logits row        double-buffered input stream
    #   ~4 x f32 logits row          (TM, C) intermediates: x_f32 / e / one-hot selects
    #   ~4 x lane-padded column      (TM, 1) f32: m, sumexp, tgt_logit, e_tgt
    per_row = 2 * c * itemsize + 4 * c * 4 + 4 * _COL_BYTES
    tm = _VMEM_PLAN_BUDGET // per_row

    # Never collapse to a single grid step: keep >= 2 blocks so the "parallel"
    # grid axis can split across v7x's two TensorCores.
    tm = min(tm, _round_up(pl.cdiv(n, 2), align))
    tm = max(align, tm - tm % align)
    return tm


def focal_loss(logits, targets, *, tm=None):
    """logits: (N, C) float (bf16/f32, fed at native width); targets: (N,) int class ids."""
    n, c = logits.shape
    itemsize = jnp.dtype(logits.dtype).itemsize
    align = _row_alignment(itemsize)

    targets2d = targets.astype(jnp.int32).reshape(n, 1)

    if tm is None:
        tm = _choose_tm(n, c, itemsize)
    else:
        # Normalize user-provided tiles to the dtype-aware sublane alignment.
        tm = min(_round_up(tm, align), _round_up(n, align))
    num_blocks = pl.cdiv(n, tm)

    kernel = functools.partial(focal_loss_kernel, n_total=n)
    partials = pl.pallas_call(
        kernel,
        out_shape=jax.ShapeDtypeStruct((num_blocks, _SUBLANES, _LANES), jnp.float32),
        grid_spec=pltpu.PrefetchScalarGridSpec(
            num_scalar_prefetch=0,
            grid=(num_blocks,),
            in_specs=[
                pl.BlockSpec((tm, c), lambda i: (i, 0)),
                pl.BlockSpec((tm, 1), lambda i: (i, 0)),
            ],
            out_specs=pl.BlockSpec((1, _SUBLANES, _LANES), lambda i: (i, 0, 0)),
        ),
        compiler_params=pltpu.CompilerParams(
            dimension_semantics=("parallel",),   # independent per-block partials
            vmem_limit_bytes=_VMEM_LIMIT_BYTES,
        ),
    )(logits, targets2d)

    # reduction='mean': tiny (num_blocks,) reduction + divide by the true N.
    # TODO(synk): the module's 'sum' / 'none' reduction branches are not exposed here.
    return jnp.sum(partials[:, 0, 0]) / jnp.float32(n)


def focal_loss_ref(logits, targets):
    # Pure-JAX reference for verification.
    logits = logits.astype(jnp.float32)
    lse = jax.nn.logsumexp(logits, axis=-1)
    tgt = jnp.take_along_axis(
        logits, targets[:, None].astype(jnp.int32), axis=-1
    )[:, 0]
    ce = lse - tgt
    p = jnp.exp(-ce)
    return jnp.mean(ALPHA * (1.0 - p) ** GAMMA * ce)


if __name__ == "__main__":
    key = jax.random.PRNGKey(0)
    k1, k2 = jax.random.split(key)
    N, C = 20, 32                                   # small batch, ViT3D-style class count
    logits = jax.random.normal(k1, (N, C), dtype=jnp.float32)
    targets = jax.random.randint(k2, (N,), 0, C, dtype=jnp.int32)

    ref = focal_loss_ref(logits, targets)

    # Explicit small tile: 3 grid steps, ragged last tile exercised (rows 20..23 masked).
    out_tiled = focal_loss(logits, targets, tm=8)
    jax.block_until_ready(out_tiled)
    assert jnp.allclose(out_tiled, ref, rtol=1e-5, atol=1e-6), (out_tiled, ref)

    # Auto tile size: capped so the grid has >= 2 blocks (v7x megacore), ragged tail masked.
    out_auto = focal_loss(logits, targets)
    jax.block_until_ready(out_auto)
    assert jnp.allclose(out_auto, ref, rtol=1e-5, atol=1e-6), (out_auto, ref)

    # bf16 logits: native-width HBM stream + 16-row (packed-sublane) tile alignment.
    logits_bf16 = logits.astype(jnp.bfloat16)
    ref_bf16 = focal_loss_ref(logits_bf16, targets)
    out_bf16 = focal_loss(logits_bf16, targets)
    jax.block_until_ready(out_bf16)
    assert jnp.allclose(out_bf16, ref_bf16, rtol=1e-5, atol=1e-6), (out_bf16, ref_bf16)

    print("KERNEL_OK")
</pallas_src>

<mosaic_0001>
module attributes {stable_mosaic.version = 11 : i64} {
  func.func @focal_loss_kernel(%arg0: i32, %arg1: memref<8x32xf32, #tpu.memory_space<vmem>>, %arg2: memref<8x1xi32, #tpu.memory_space<vmem>>, %arg3: memref<1x8x128xf32, #tpu.memory_space<vmem>>) attributes {dimension_semantics = [#tpu.dimension_semantics<parallel>], iteration_bounds = array<i64: 3>, scalar_prefetch = 0 : i64, scratch_operands = 0 : i64, tpu.core_type = #tpu.core_type<tc>, window_params = [{transform_indices = @transform_0, window_bounds = array<i64: 8, 32>}, {transform_indices = @transform_1, window_bounds = array<i64: 8, 1>}, {transform_indices = @transform_2, window_bounds = array<i64: 1, 8, 128>}]} {
    %c0 = arith.constant 0 : index
    %c0_0 = arith.constant 0 : index
    %0 = vector.load %arg1[%c0, %c0_0] : memref<8x32xf32, #tpu.memory_space<vmem>>, vector<8x32xf32>
    %c0_1 = arith.constant 0 : index
    %c0_2 = arith.constant 0 : index
    %1 = vector.load %arg2[%c0_1, %c0_2] : memref<8x1xi32, #tpu.memory_space<vmem>>, vector<8x1xi32>
    %2 = tpu.iota {dimensions = array<i32: 0>} : vector<8x1xi32>
    %c8_i32 = arith.constant 8 : i32
    %3 = arith.muli %arg0, %c8_i32 : i32
    %4 = vector.broadcast %3 : i32 to vector<8x1xi32>
    %5 = arith.addi %4, %2 : vector<8x1xi32>
    %c20_i32 = arith.constant 20 : i32
    %6 = vector.broadcast %c20_i32 : i32 to vector<8x1xi32>
    %7 = arith.cmpi slt, %5, %6 : vector<8x1xi32>
    %cst = arith.constant 0.000000e+00 : f32
    %8 = vector.shape_cast %7 : vector<8x1xi1> to vector<8x1xi1>
    %9 = vector.broadcast %8 : vector<8x1xi1> to vector<8x32xi1>
    %10 = vector.broadcast %cst : f32 to vector<8x32xf32>
    %11 = arith.select %9, %0, %10 : vector<8x32xi1>, vector<8x32xf32>
    %c0_i32 = arith.constant 0 : i32
    %12 = vector.broadcast %c0_i32 : i32 to vector<8x1xi32>
    %13 = arith.select %7, %1, %12 : vector<8x1xi1>, vector<8x1xi32>
    %cst_3 = arith.constant dense<0xFF800000> : vector<8xf32>
    %14 = vector.multi_reduction <maximumf>, %11, %cst_3 [1] : vector<8x32xf32> to vector<8xf32>
    %15 = vector.shape_cast %14 : vector<8xf32> to vector<8x1xf32>
    %16 = vector.broadcast %15 : vector<8x1xf32> to vector<8x32xf32>
    %17 = arith.subf %11, %16 : vector<8x32xf32>
    %18 = math.exp %17 : vector<8x32xf32>
    %cst_4 = arith.constant dense<0.000000e+00> : vector<8xf32>
    %19 = vector.multi_reduction <add>, %18, %cst_4 [1] : vector<8x32xf32> to vector<8xf32>
    %20 = vector.shape_cast %19 : vector<8xf32> to vector<8x1xf32>
    %21 = math.log %20 : vector<8x1xf32>
    %22 = arith.addf %15, %21 : vector<8x1xf32>
    %23 = tpu.iota {dimensions = array<i32: 1>} : vector<8x32xi32>
    %24 = vector.broadcast %13 : vector<8x1xi32> to vector<8x32xi32>
    %25 = arith.cmpi eq, %23, %24 : vector<8x32xi32>
    %cst_5 = arith.constant 0.000000e+00 : f32
    %26 = vector.broadcast %cst_5 : f32 to vector<8x32xf32>
    %27 = arith.select %25, %11, %26 : vector<8x32xi1>, vector<8x32xf32>
    %cst_6 = arith.constant dense<0.000000e+00> : vector<8xf32>
    %28 = vector.multi_reduction <add>, %27, %cst_6 [1] : vector<8x32xf32> to vector<8xf32>
    %29 = vector.shape_cast %28 : vector<8xf32> to vector<8x1xf32>
    %cst_7 = arith.constant 0.000000e+00 : f32
    %30 = vector.broadcast %cst_7 : f32 to vector<8x32xf32>
    %31 = arith.select %25, %18, %30 : vector<8x32xi1>, vector<8x32xf32>
    %cst_8 = arith.constant dense<0.000000e+00> : vector<8xf32>
    %32 = vector.multi_reduction <add>, %31, %cst_8 [1] : vector<8x32xf32> to vector<8xf32>
    %33 = vector.shape_cast %32 : vector<8xf32> to vector<8x1xf32>
    %34 = arith.subf %22, %29 : vector<8x1xf32>
    %35 = tpu.reciprocal %20 : vector<8x1xf32> -> vector<8x1xf32>
    %36 = arith.mulf %33, %35 : vector<8x1xf32>
    %cst_9 = arith.constant 1.000000e+00 : f32
    %37 = vector.broadcast %cst_9 : f32 to vector<8x1xf32>
    %38 = arith.subf %37, %36 : vector<8x1xf32>
    %cst_10 = arith.constant 2.500000e-01 : f32
    %39 = vector.broadcast %cst_10 : f32 to vector<8x1xf32>
    %40 = arith.mulf %39, %38 : vector<8x1xf32>
    %41 = arith.mulf %40, %38 : vector<8x1xf32>
    %42 = arith.mulf %41, %34 : vector<8x1xf32>
    %cst_11 = arith.constant 0.000000e+00 : f32
    %43 = vector.broadcast %cst_11 : f32 to vector<8x1xf32>
    %44 = arith.select %7, %42, %43 : vector<8x1xi1>, vector<8x1xf32>
    %45 = vector.shape_cast %44 : vector<8x1xf32> to vector<1x8x1xf32>
    %cst_12 = arith.constant dense<0.000000e+00> : vector<1xf32>
    %46 = vector.multi_reduction <add>, %45, %cst_12 [1, 2] : vector<1x8x1xf32> to vector<1xf32>
    %47 = vector.shape_cast %46 : vector<1xf32> to vector<1x1x1xf32>
    %48 = vector.extract %47[0, 0, 0] : f32 from vector<1x1x1xf32>
    %49 = vector.broadcast %48 : f32 to vector<1x8x128xf32>
    %c0_13 = arith.constant 0 : index
    %c0_14 = arith.constant 0 : index
    %c0_15 = arith.constant 0 : index
    %50 = vector.load %arg3[%c0_13, %c0_14, %c0_15] : memref<1x8x128xf32, #tpu.memory_space<vmem>>, vector<1x8x128xf32>
    tpu.vector_store %arg3[%c0_13, %c0_14, %c0_15], %49 {strides = array<i32>} : memref<1x8x128xf32, #tpu.memory_space<vmem>>, vector<1x8x128xf32>,
    return
  }
  func.func @transform_0(%arg0: i32) -> (i32, i32) {
    %c0_i32 = arith.constant 0 : i32
    %c0_i32_0 = arith.constant 0 : i32
    return %arg0, %c0_i32 : i32, i32
  }
  func.func @transform_1(%arg0: i32) -> (i32, i32) {
    %c0_i32 = arith.constant 0 : i32
    %c0_i32_0 = arith.constant 0 : i32
    return %arg0, %c0_i32 : i32, i32
  }
  func.func @transform_2(%arg0: i32) -> (i32, i32, i32) {
    %c0_i32 = arith.constant 0 : i32
    %c0_i32_0 = arith.constant 0 : i32
    %c0_i32_1 = arith.constant 0 : i32
    return %arg0, %c0_i32, %c0_i32_0 : i32, i32, i32
  }
}

</mosaic_0001>

<llo_original>
// kernel: tpu_custom_call.1
$region0: #{tpu_custom_call.1}
  #allocation0 [shape = 'u32[]', space=smem, size = 0x4, offset = 0x4, fixed_abs, tag = 'smem constant byte address 0x4 - core index']
  #allocation1 [shape = 'u32[144,128]{1,0:T(1,128)}', space=vmem, size = 0x12000, scoped, tag = 'internal scratch']
  %s0 = inlined_call_operand.vmem [shape: f32[20,32], index: 0, kind: input, shape index: {}]
  %s1 = inlined_call_operand.vmem [shape: s32[20,1], index: 1, kind: input, shape index: {}]
  %s2 = inlined_call_operand.hbm [shape: f32[3,8,128], index: 2, kind: output, shape index: {}]
  %s3 = sld [smem:[#allocation0]]
  $region41: #{tpu_custom_call.1} parent=0
    _
  %s5 = ssub.s32 1, %s3
  %s6 = scalar_select 0, %s5, %s3
  $region1: #{tpu_custom_call.1} parent=0
    #allocation2 [shape = 'u8[8192]{0}', space=vmem, size = 0x2000, scoped, tag = 'output window, operand 0']
    #allocation3 [shape = 's32[2]{0}', space=sflag, size = 0x8, scoped, tag = 'scoped memory for tpu_custom_call.1']
    %7 = vsyncpa [#allocation3], 0
    %s8 = scalar_lea.sflag [#allocation3], 1
    %9 = vsyncpa %s8, 0
    loop: start=0, step=1, limit=5
    $region2: #{tpu_custom_call.1} parent=1 // loop_pre_header
      _
    $region3: #{tpu_custom_call.1} parent=1 // loop_header
      %s11 = sphi 0, %s15
      %p12 = scmp.ge.s32.totalorder %s11, 5
      %s21 = sphi 0, %s23
      %s24 = sphi 0, %s21
      %s25 = sphi 0, %s24
      %s41 = sphi 0, %s25
      %s47 = sphi 0, %s49
      %s50 = sphi 0, %s47
      %s51 = sphi 0, %s50
      %s67 = sphi 0, %s51
      %s73 = sphi 0, %s75
      %s76 = sphi 0, %s73
      %s77 = sphi 0, %s76
      %s93 = sphi 0, %s77
    $region4: #{tpu_custom_call.1} parent=1 // loop_header_branch
      %14 = sbr.rel (%p12) target = $region8
    $region5: #{tpu_custom_call.1} parent=1 // loop_body
      %s16 = ssub.s32 %s11, 1
      %s17 = ssub.s32 %s11, 2
      %s18 = sadd.s32 %s11, 1
      %s19 = ssub.s32 %s11, %s18
      %p20 = scmp.eq.s32.totalorder %s19, 0
      %s22 = sadd.s32 %s21, 1
      %s23 = scalar_select %p20, %s21, %s22
      %p26 = pneg %p20
      %p27 = scmp.eq.s32.totalorder %s11, 2
      %p28 = por %p26, %p27
      %p29 = scmp.ne.s32.totalorder %s21, %s24
      %p30 = scmp.eq.s32.totalorder %s11, 0
      %p31 = por %p29, %p30
      %p32 = scmp.ne.s32.totalorder %s21, %s24
      %p33 = scmp.eq.s32.totalorder %s16, 2
      %p34 = por %p32, %p33
      %p35 = scmp.ne.s32.totalorder %s24, %s25
      %p36 = scmp.eq.s32.totalorder %s16, 0
      %p37 = por %p35, %p36
      %p38 = scmp.ne.s32.totalorder %s24, %s25
      %p39 = scmp.eq.s32.totalorder %s17, 2
      %p40 = por %p38, %p39
      %p42 = scmp.ne.s32.totalorder %s25, %s41
      %p43 = scmp.eq.s32.totalorder %s17, 0
      %p44 = por %p42, %p43
      %s45 = ssub.s32 %s11, %s18
      %p46 = scmp.eq.s32.totalorder %s45, 0
      %s48 = sadd.s32 %s47, 1
      %s49 = scalar_select %p46, %s47, %s48
      %p52 = pneg %p46
      %p53 = scmp.eq.s32.totalorder %s11, 2
      %p54 = por %p52, %p53
      %p55 = scmp.ne.s32.totalorder %s47, %s50
      %p56 = scmp.eq.s32.totalorder %s11, 0
      %p57 = por %p55, %p56
      %p58 = scmp.ne.s32.totalorder %s47, %s50
      %p59 = scmp.eq.s32.totalorder %s16, 2
      %p60 = por %p58, %p59
      %p61 = scmp.ne.s32.totalorder %s50, %s51
      %p62 = scmp.eq.s32.totalorder %s16, 0
      %p63 = por %p61, %p62
      %p64 = scmp.ne.s32.totalorder %s50, %s51
      %p65 = scmp.eq.s32.totalorder %s17, 2
      %p66 = por %p64, %p65
      %p68 = scmp.ne.s32.totalorder %s51, %s67
      %p69 = scmp.eq.s32.totalorder %s17, 0
      %p70 = por %p68, %p69
      %s71 = ssub.s32 %s11, %s18
      %p72 = scmp.eq.s32.totalorder %s71, 0
      %s74 = sadd.s32 %s73, 1
      %s75 = scalar_select %p72, %s73, %s74
      %p78 = pneg %p72
      %p79 = scmp.eq.s32.totalorder %s11, 2
      %p80 = por %p78, %p79
      %p81 = scmp.ne.s32.totalorder %s73, %s76
      %p82 = scmp.eq.s32.totalorder %s11, 0
      %p83 = por %p81, %p82
      %p84 = scmp.ne.s32.totalorder %s73, %s76
      %p85 = scmp.eq.s32.totalorder %s16, 2
      %p86 = por %p84, %p85
      %p87 = scmp.ne.s32.totalorder %s76, %s77
      %p88 = scmp.eq.s32.totalorder %s16, 0
      %p89 = por %p87, %p88
      %p90 = scmp.ne.s32.totalorder %s76, %s77
      %p91 = scmp.eq.s32.totalorder %s17, 2
      %p92 = por %p90, %p91
      %p94 = scmp.ne.s32.totalorder %s77, %s93
      %p95 = scmp.eq.s32.totalorder %s17, 0
      %p96 = por %p94, %p95
      %p97 = scmp.le.s32.totalorder 1, %s11
      %p98 = scmp.lt.s32.totalorder %s11, 4
      %p99 = pnand %p97, %p98
      %p100 = pneg %p99
      // Predicated region
      $region9: #{tpu_custom_call.1} parent=5 // pred_check
        _
      $region10: #{tpu_custom_call.1} parent=5 // pred_check_branch
        %102 = sbr.rel (%p99) target = $region12
      $region11: #{tpu_custom_call.1} parent=5 // pred_region
        %s103 = ssub.s32 %s11, 1
      $region12: #{tpu_custom_call.1} parent=5 // pred_fallthru
        _
      %p104 = scmp.lt.s32.totalorder %s11, 3
      // Predicated region
      $region13: #{tpu_custom_call.1} parent=5 // pred_check
        %p105 = pneg %p104
      $region14: #{tpu_custom_call.1} parent=5 // pred_check_branch
        %107 = sbr.rel (%p105) target = $region16
      $region15: #{tpu_custom_call.1} parent=5 // pred_region
        // Predicated region
        $region17: #{tpu_custom_call.1} parent=15 // pred_check
          %p108 = pneg %p31
        $region18: #{tpu_custom_call.1} parent=15 // pred_check_branch
          %110 = sbr.rel (%p108) target = $region20
        $region19: #{tpu_custom_call.1} parent=15 // pred_region
          %p111 = scmp.lt.s32.totalorder %s11, 2
          %s112 = scalar_select %p111, %s11, 2
          %s113 = smul.addr %s112, 8
          %s114 = scalar_lea.vmem %s0, %s113
        $region20: #{tpu_custom_call.1} parent=15 // pred_fallthru
          _
        // Predicated region
        $region21: #{tpu_custom_call.1} parent=15 // pred_check
          %p115 = pneg %p57
        $region22: #{tpu_custom_call.1} parent=15 // pred_check_branch
          %117 = sbr.rel (%p115) target = $region24
        $region23: #{tpu_custom_call.1} parent=15 // pred_region
          %p118 = scmp.lt.s32.totalorder %s11, 2
          %s119 = scalar_select %p118, %s11, 2
          %s120 = smul.addr %s119, 8
          %s121 = scalar_lea.vmem %s1, %s120
        $region24: #{tpu_custom_call.1} parent=15 // pred_fallthru
          _
      $region16: #{tpu_custom_call.1} parent=5 // pred_fallthru
        _
      %p122 = scmp.le.s32.totalorder 1, %s11
      %p123 = scmp.lt.s32.totalorder %s11, 4
      %p124 = pnand %p122, %p123
      %p125 = pneg %p124
      // Predicated region
      $region25: #{tpu_custom_call.1} parent=5 // pred_check
        _
      $region26: #{tpu_custom_call.1} parent=5 // pred_check_branch
        %127 = sbr.rel (%p124) target = $region28
      $region27: #{tpu_custom_call.1} parent=5 // pred_region
        %s128 = ssub.s32 %s11, 1
        %p129 = scmp.lt.s32.totalorder %s16, 2
        %s130 = scalar_select %p129, %s16, 2
        %s131 = smul.addr %s130, 8
        %s132 = scalar_lea.vmem %s0, %s131
        %p133 = pneg %p37
        %p134 = pneg %p34
        %p135 = scmp.lt.s32.totalorder %s16, 2
        %s136 = scalar_select %p135, %s16, 2
        %s137 = smul.addr %s136, 8
        %s138 = scalar_lea.vmem %s1, %s137
        %p139 = pneg %p63
        %p140 = pneg %p60
        %p141 = pneg %p89
        %p142 = pneg %p86
        %s143 = sand.u32 %s76, 1
        %s144 = scalar_lea.sflag [#allocation3], %s143
        %s145 = sand.u32 %s76, 1
        %s146 = smul.addr %s145, 8
        %s147 = scalar_lea.vmem [#allocation2], %s146
        %p148 = scmp.lt.s32.totalorder %s16, 2
        %s149 = scalar_select %p148, %s16, 2
        %s150 = smul.addr %s149, 8
        %s151 = scalar_lea.vmem %s0, %s150
        %p152 = scmp.lt.s32.totalorder %s16, 2
        %s153 = scalar_select %p152, %s16, 2
        %s154 = smul.addr %s153, 8
        %s155 = scalar_lea.vmem %s1, %s154
        %v156 = vld [vmem:[%s151] sm:$0xff]
        %v157 = vld [vmem:[%s155] sm:$0xff]
        %v158 = vlaneseq
        %v159 = vshrl.u32 %v158, 7
        %s160 = smul.u32 %s16, 8
        %v161 = vstv %s160
        %v162 = vadd.s32 %v161, %v159
        %vm163 = vcmp.lt.s32.totalorder %v162, 20
        %v164 = vsel %vm163, 1, 0
        %vm165 = vcmp.eq.s32.totalorder %v164, 1
        %v166 = vsel %vm165, %v156, 0.0
        %v167 = vsel %vm163, %v157, 0
        %vm168 = vcmask 261120
        %v169 = vsel %vm168, %v166, -inf
        %170 = vmax.xlane.f32.xlu0 %v169
        %v171 = vpop.xlane.xlu0 %170
        %v172 = vsub.f32 %v166, %v171
        %v173 = vmul.f32 %v172, 1.442695
        %v174 = vpow.pop %v173
        %v175 = vsel %vm168, %v174, 0.0
        %176 = vadd.xlane.f32.xlu0 %v175
        %v177 = vpop.xlane.xlu0 %176
        %v178 = vlog2.pop %v177
        %v179 = vmul.f32 %v178, 0.6931472
        %v180 = vadd.f32 %v171, %v179
        %v181 = vlaneseq
        %v182 = vand.u32 %v181, 127
        %183 = vset.pattern.permute.xlu0 0
        %184 = vperm.xlu0 %183, %v167
        %v185 = vpop.permute.xlu0 %184
        %vm186 = vcmp.eq.s32.totalorder %v182, %v185
        %v187 = vsel %vm186, %v166, 0.0
        %v188 = vsel %vm168, %v187, 0.0
        %189 = vadd.xlane.f32.xlu0 %v188
        %v190 = vpop.xlane.xlu0 %189
        %v191 = vsel %vm186, %v174, 0.0
        %v192 = vsel %vm168, %v191, 0.0
        %193 = vadd.xlane.f32.xlu0 %v192
        %v194 = vpop.xlane.xlu0 %193
        %v195 = vsub.f32 %v180, %v190
        %v196 = vrcp.pop %v177
        %v197 = vmul.f32 %v194, %v196
        %v198 = vsub.f32 1.0, %v197
        %v199 = vmul.f32 %v198, 0.25
        %v200 = vmul.f32 %v199, %v198
        %v201 = vmul.f32 %v200, %v195
        %v202 = vsel %vm163, %v201, 0.0
        %vm203 = vcmask 7168
        %v204 = vsel %vm203, %v202, 0.0
        %205 = vadd.xlane.f32.xlu0 %v204
        %v206 = vpop.xlane.xlu0 %205
        %v207 = vrot.slane %v206, 4
        %v208 = vadd.f32 %v206, %v207
        %v209 = vrot.slane %v208, 2
        %v210 = vadd.f32 %v208, %v209
        %v211 = vrot.slane %v210, 1
        %v212 = vadd.f32 %v210, %v211
        %s213 = vtos %v212
        %v214 = vstv %s213
        %215 = vst [vmem:[%s147] sm:$0xff] %v214
        %s216 = sand.u32 %s76, 1
        %s217 = scalar_lea.sflag [#allocation3], %s216
        %s218 = sand.u32 %s76, 1
        %s219 = smul.addr %s218, 8
        %s220 = scalar_lea.vmem [#allocation2], %s219
        // Predicated region
        $region29: #{tpu_custom_call.1} parent=27 // pred_check
          %p221 = pneg %p86
        $region30: #{tpu_custom_call.1} parent=27 // pred_check_branch
          %223 = sbr.rel (%p221) target = $region32
        $region31: #{tpu_custom_call.1} parent=27 // pred_region
          %s225 = ssub.s32 128, 128
          %226 = vsyncadd %s217, %s225
          %s227 = smul.addr %s16, 128
          %s228 = scalar_lea.hbm %s2, %s227
          %s230 = sshll.u32 %s220, 4
          %s231 = int_to_ptr.vmem [resolvable:$true] %s230
          %233 = dma.vmem_to_hbm [thread:$0]  %s231, 128, %s228, %s217
        $region32: #{tpu_custom_call.1} parent=27 // pred_fallthru
          _
      $region28: #{tpu_custom_call.1} parent=5 // pred_fallthru
        _
      %p234 = scmp.le.s32.totalorder 2, %s11
      // Predicated region
      $region33: #{tpu_custom_call.1} parent=5 // pred_check
        %p235 = pneg %p234
      $region34: #{tpu_custom_call.1} parent=5 // pred_check_branch
        %237 = sbr.rel (%p235) target = $region36
      $region35: #{tpu_custom_call.1} parent=5 // pred_region
        %s238 = ssub.s32 %s11, 2
        // Predicated region
        $region37: #{tpu_custom_call.1} parent=35 // pred_check
          %p239 = pneg %p92
        $region38: #{tpu_custom_call.1} parent=35 // pred_check_branch
          %241 = sbr.rel (%p239) target = $region40
        $region39: #{tpu_custom_call.1} parent=35 // pred_region
          %s242 = sand.u32 %s77, 1
          %s243 = scalar_lea.sflag [#allocation3], %s242
          %s244 = sand.u32 %s77, 1
          %s245 = smul.addr %s244, 8
          %s246 = scalar_lea.vmem [#allocation2], %s245
          %247 = dma.done %s243, 128
        $region40: #{tpu_custom_call.1} parent=35 // pred_fallthru
          _
      $region36: #{tpu_custom_call.1} parent=5 // pred_fallthru
        _
    $region6: #{tpu_custom_call.1} parent=1 // loop_footer
      %s15 = sadd.s32 1, %s11
    $region7: #{tpu_custom_call.1} parent=1 // loop_footer_branch
      %10 = sbr.rel target = $region3
    $region8: #{tpu_custom_call.1} parent=1 // loop_exit
      _
    %248 = vsyncpa [#allocation3], 1
    %s249 = scalar_lea.sflag [#allocation3], 1
    %250 = vsyncpa %s249, 1

</llo_original>
